<compile_context>
chip_gen: v5e
topology: v5e:2x2
jax: 0.10.0
libtpu: 0.0.40
codegen_flags: <defaults>
</compile_context>

<pallas_src>
import functools
import math

import jax
import jax.numpy as jnp
from jax.experimental import pallas as pl
from jax.experimental.pallas import tpu as pltpu


def _cdiv(a, b):
    return -(-a // b)


def _round_up(a, b):
    return _cdiv(a, b) * b


def _vmem_budget_bytes():
    """~3/4 of physical VMEM, capped at 96 MiB (v5e/v6e: 128 MiB phys -> 96;
    v7x: 64 MiB per TensorCore -> 48).  Falls back conservatively."""
    try:
        cap = int(pltpu.get_tpu_info().vmem_capacity_bytes)
        if cap <= 0:
            cap = 64 * 1024 * 1024
    except Exception:
        cap = 64 * 1024 * 1024
    return max(32 * 1024 * 1024, min((cap * 3) // 4, 96 * 1024 * 1024))


# --------------------------------------------------------------------------
# Kernels
# --------------------------------------------------------------------------
def _gn_fused_kernel(x_ref, gamma_ref, beta_ref, y_ref, stats_ref, *,
                     eps, inv_count):
    # x_ref:     (B, base, Lp)   B super-rows, each row = one (sample, group)
    # gamma_ref: (1, base, Lp)   per-group params, DMA'd once (constant map)
    # beta_ref:  (1, base, Lp)
    # y_ref:     (B, base, Lp)
    # stats_ref: (B, base, 2)    [..., 0] = mean, [..., 1] = biased var
    x = x_ref[...].astype(jnp.float32)

    # One-pass stats: the two lane reductions are independent (XLU overlap),
    # and zero-padded lanes contribute nothing since we divide by the true L.
    s = jnp.sum(x, axis=-1, keepdims=True)              # (B, base, 1)
    sq = jnp.sum(x * x, axis=-1, keepdims=True)         # (B, base, 1)
    mean = s * inv_count
    var = jnp.maximum(sq * inv_count - mean * mean, 0.0)

    rstd = jax.lax.rsqrt(var + eps)                      # EUP
    scale = gamma_ref[...] * rstd                        # (B, base, Lp)
    y_ref[...] = ((x - mean) * scale + beta_ref[...]).astype(y_ref.dtype)

    stats_ref[...] = jnp.concatenate([mean, var], axis=-1)   # single store


def _gn_reduce_kernel(x_ref, stats_ref, sum_sc, sq_sc, *, inv_count):
    # grid = (row_blocks, lane_chunks); lane axis is the reduction ("arbitrary").
    j = pl.program_id(1)

    @pl.when(j == 0)
    def _():
        sum_sc[...] = jnp.zeros_like(sum_sc)
        sq_sc[...] = jnp.zeros_like(sq_sc)

    x = x_ref[...].astype(jnp.float32)                   # (B, base, Lc)
    sum_sc[...] += jnp.sum(x, axis=-1, keepdims=True)
    sq_sc[...] += jnp.sum(x * x, axis=-1, keepdims=True)

    @pl.when(j == pl.num_programs(1) - 1)
    def _():
        mean = sum_sc[...] * inv_count
        var = jnp.maximum(sq_sc[...] * inv_count - mean * mean, 0.0)
        stats_ref[...] = jnp.concatenate([mean, var], axis=-1)


def _gn_norm_kernel(x_ref, gamma_ref, beta_ref, stats_ref, y_ref, *, eps):
    st = stats_ref[...]                                  # (B, base, 2)
    mean = st[:, :, 0:1]
    var = st[:, :, 1:2]
    rstd = jax.lax.rsqrt(var + eps)
    x = x_ref[...].astype(jnp.float32)                   # (B, base, Lc)
    scale = gamma_ref[...] * rstd
    y_ref[...] = ((x - mean) * scale + beta_ref[...]).astype(y_ref.dtype)


# --------------------------------------------------------------------------
# Wrapper
# --------------------------------------------------------------------------
def group_norm_pallas(x, gamma, beta, *, G=4, eps=1e-5, _force_lane_chunk=None):
    """x: (N, C, H, W) NCHW; gamma/beta: (1, C, 1, 1).

    Returns (y, xmean, xvar) with xmean/xvar of shape (N, G, 1, 1)."""
    N, C, H, W = x.shape
    assert C % G == 0, "channels must be divisible by the number of groups"
    Cg = C // G
    HW = H * W
    L = Cg * HW                       # true reduction length per (sample, group)
    Rtot = N * G
    base = (8 * G) // math.gcd(8, G)  # lcm(8, G): sublane-full & group-periodic
    itemsize = jnp.dtype(x.dtype).itemsize

    vmem_limit = _vmem_budget_bytes()
    # Per-buffer cap; total ~= 2*x + 2*y (double-buffered) + small params/stats.
    max_block_bytes = min(8 * 1024 * 1024, vmem_limit // 6)

    # ---- choose single-pass (whole row resident) vs lane-chunked two-pass ----
    single_pass = (_force_lane_chunk is None and
                   base * _round_up(L, 128) * itemsize <= max_block_bytes)
    if single_pass:
        n_chunks = 1
        Lc = Lp = _round_up(L, 128)
    else:
        lc_cap = (_force_lane_chunk if _force_lane_chunk is not None else
                  max(128, ((max_block_bytes // (base * itemsize)) // 128) * 128))
        n_chunks = _cdiv(L, lc_cap)
        Lc = _round_up(_cdiv(L, n_chunks), 128)
        Lp = n_chunks * Lc

    Rtot_pad = _round_up(Rtot, base)
    n_super = Rtot_pad // base

    # ---- pack x as (n_super, base, Lp), zero-padding ragged rows/lanes ----
    x2 = x.reshape(Rtot, L)
    if Rtot_pad != Rtot or Lp != L:
        x2 = jnp.pad(x2, ((0, Rtot_pad - Rtot), (0, Lp - L)))
    x3 = x2.reshape(n_super, base, Lp)

    # ---- compact gamma/beta: one (1, base, Lp) tile, DMA'd once ----
    gamma_rows = jnp.broadcast_to(
        gamma.reshape(G, Cg, 1).astype(jnp.float32), (G, Cg, HW)).reshape(G, L)
    beta_rows = jnp.broadcast_to(
        beta.reshape(G, Cg, 1).astype(jnp.float32), (G, Cg, HW)).reshape(G, L)
    gamma_b = jnp.tile(gamma_rows, (base // G, 1))        # (base, L)
    beta_b = jnp.tile(beta_rows, (base // G, 1))
    if Lp != L:
        gamma_b = jnp.pad(gamma_b, ((0, 0), (0, Lp - L)))
        beta_b = jnp.pad(beta_b, ((0, 0), (0, Lp - L)))
    gamma3 = gamma_b.reshape(1, base, Lp)
    beta3 = beta_b.reshape(1, base, Lp)

    inv_count = 1.0 / float(L)

    if single_pass:
        # Grow super-rows per step up to the byte budget, keeping >= 2 grid
        # steps when possible (so both v7x TensorCores get work / pipelining).
        bytes_per_super = base * Lp * itemsize
        B = 1
        while (n_super % (2 * B) == 0
               and 2 * B * bytes_per_super <= max_block_bytes
               and n_super // (2 * B) >= 2):
            B *= 2
        grid = (n_super // B,)

        kernel = functools.partial(_gn_fused_kernel, eps=eps, inv_count=inv_count)
        y3, stats3 = pl.pallas_call(
            kernel,
            out_shape=(
                jax.ShapeDtypeStruct((n_super, base, Lp), x.dtype),
                jax.ShapeDtypeStruct((n_super, base, 2), jnp.float32),
            ),
            grid_spec=pltpu.PrefetchScalarGridSpec(
                num_scalar_prefetch=0,
                grid=grid,
                in_specs=[
                    pl.BlockSpec((B, base, Lp), lambda i: (i, 0, 0)),
                    pl.BlockSpec((1, base, Lp), lambda i: (0, 0, 0)),  # gamma
                    pl.BlockSpec((1, base, Lp), lambda i: (0, 0, 0)),  # beta
                ],
                out_specs=[
                    pl.BlockSpec((B, base, Lp), lambda i: (i, 0, 0)),
                    pl.BlockSpec((B, base, 2), lambda i: (i, 0, 0)),
                ],
            ),
            compiler_params=pltpu.CompilerParams(
                dimension_semantics=("parallel",),
                vmem_limit_bytes=vmem_limit,
            ),
        )(x3, gamma3, beta3)
    else:
        # Two-pass path for L too large to keep resident: reduce, then normalize.
        B = 1
        # Pass 1: per-(sample, group) sum / sum-of-squares -> mean, var.
        reduce_kernel = functools.partial(_gn_reduce_kernel, inv_count=inv_count)
        stats3 = pl.pallas_call(
            reduce_kernel,
            out_shape=jax.ShapeDtypeStruct((n_super, base, 2), jnp.float32),
            grid_spec=pltpu.PrefetchScalarGridSpec(
                num_scalar_prefetch=0,
                grid=(n_super, n_chunks),
                in_specs=[pl.BlockSpec((B, base, Lc), lambda i, j: (i, 0, j))],
                out_specs=pl.BlockSpec((B, base, 2), lambda i, j: (i, 0, 0)),
                scratch_shapes=[pltpu.VMEM((B, base, 1), jnp.float32),
                                pltpu.VMEM((B, base, 1), jnp.float32)],
            ),
            compiler_params=pltpu.CompilerParams(
                dimension_semantics=("parallel", "arbitrary"),
                vmem_limit_bytes=vmem_limit,
            ),
        )(x3)

        # Pass 2: elementwise normalize + affine (re-reads x; both axes parallel).
        norm_kernel = functools.partial(_gn_norm_kernel, eps=eps)
        y3 = pl.pallas_call(
            norm_kernel,
            out_shape=jax.ShapeDtypeStruct((n_super, base, Lp), x.dtype),
            grid_spec=pltpu.PrefetchScalarGridSpec(
                num_scalar_prefetch=0,
                grid=(n_super, n_chunks),
                in_specs=[
                    pl.BlockSpec((B, base, Lc), lambda i, j: (i, 0, j)),
                    pl.BlockSpec((1, base, Lc), lambda i, j: (0, 0, j)),  # gamma
                    pl.BlockSpec((1, base, Lc), lambda i, j: (0, 0, j)),  # beta
                    pl.BlockSpec((B, base, 2), lambda i, j: (i, 0, 0)),   # stats
                ],
                out_specs=pl.BlockSpec((B, base, Lc), lambda i, j: (i, 0, j)),
            ),
            compiler_params=pltpu.CompilerParams(
                dimension_semantics=("parallel", "parallel"),
                vmem_limit_bytes=vmem_limit,
            ),
        )(x3, gamma3, beta3, stats3)

    # ---- unpack ----
    y2 = y3.reshape(Rtot_pad, Lp)
    stats2 = stats3.reshape(Rtot_pad, 2)
    if Rtot_pad != Rtot or Lp != L:
        y2 = y2[:Rtot, :L]
        stats2 = stats2[:Rtot]
    y = y2.reshape(N, C, H, W)
    xmean = stats2[:, 0].reshape(N, G, 1, 1)
    xvar = stats2[:, 1].reshape(N, G, 1, 1)
    return y, xmean, xvar


class GNPallas:
    """JAX mirror of the PyTorch GN module (training-mode forward path)."""

    def __init__(self, input_dim, G=4, eps=1e-5, mom=0.9, batch_size=2):
        self.input_dim = input_dim
        self.G = G
        self.eps = eps
        self.mom = mom
        self.batch_size = batch_size
        # Deterministic init, matching nn.Module __init__:
        self.gamma = jnp.ones((1, input_dim, 1, 1), jnp.float32)
        self.beta = jnp.zeros((1, input_dim, 1, 1), jnp.float32)
        self.moving_mean = jnp.zeros((batch_size, G, 1, 1, 1), jnp.float32)
        self.moving_var = jnp.ones((batch_size, G, 1, 1, 1), jnp.float32)
        # TODO(synk): eval-mode branch (normalize with moving stats) is plain
        # JAX glue if needed; only the training-mode forward is kernelized here.

    def __call__(self, x):
        y, xmean, xvar = group_norm_pallas(
            x, self.gamma, self.beta, G=self.G, eps=self.eps
        )
        # Moving-stat update (side effect under torch.no_grad in the original).
        xmean5 = xmean.reshape(xmean.shape[0], self.G, 1, 1, 1)
        xvar5 = xvar.reshape(xvar.shape[0], self.G, 1, 1, 1)
        self.moving_mean = self.mom * self.moving_mean + (1 - self.mom) * xmean5
        self.moving_var = self.mom * self.moving_var + (1 - self.mom) * xvar5
        return y


# --------------------------------------------------------------------------
# Reference + tests
# --------------------------------------------------------------------------
def _reference_gn(x, gamma, beta, G, eps):
    N, C, H, W = x.shape
    xg = x.reshape(N, G, C // G, H, W).astype(jnp.float32)
    m = xg.mean(axis=(2, 3, 4), keepdims=True)
    v = ((xg - m) ** 2).mean(axis=(2, 3, 4), keepdims=True)
    xn = (xg - m) / jnp.sqrt(v + eps)
    return xn.reshape(N, C, H, W) * gamma + beta


def _check(name, x, G, eps=1e-5, force_lane_chunk=None):
    key_g, key_b = jax.random.split(jax.random.PRNGKey(123), 2)
    C = x.shape[1]
    gamma = jax.random.normal(key_g, (1, C, 1, 1), jnp.float32)
    beta = jax.random.normal(key_b, (1, C, 1, 1), jnp.float32)

    y, m, v = group_norm_pallas(x, gamma, beta, G=G, eps=eps,
                                _force_lane_chunk=force_lane_chunk)
    y = jax.block_until_ready(y)

    y_ref = _reference_gn(x, gamma, beta, G, eps)
    assert jnp.allclose(y, y_ref, atol=1e-4, rtol=1e-4), f"{name}: y mismatch"

    N = x.shape[0]
    xg = x.reshape(N, G, -1).astype(jnp.float32)
    m_ref = xg.mean(-1).reshape(N, G, 1, 1)
    v_ref = ((xg - xg.mean(-1, keepdims=True)) ** 2).mean(-1).reshape(N, G, 1, 1)
    assert jnp.allclose(m, m_ref, atol=1e-5, rtol=1e-5), f"{name}: mean mismatch"
    assert jnp.allclose(v, v_ref, atol=1e-5, rtol=1e-5), f"{name}: var mismatch"


if __name__ == "__main__":
    key = jax.random.PRNGKey(0)
    k1, k2, k3 = jax.random.split(key, 3)
    G = 4

    # 1) Basic aligned case (single-pass fused kernel).
    x1 = jax.random.normal(k1, (2, 8, 16, 16), jnp.float32)
    _check("basic", x1, G)

    # 2) Ragged rows (N*G not a multiple of 8) and ragged lanes (L % 128 != 0).
    x2 = jax.random.normal(k2, (3, 8, 10, 10), jnp.float32)
    _check("ragged", x2, G)

    # 3) Lane-chunked two-pass path (forced small chunk to exercise it here).
    _check("chunked", x1, G, force_lane_chunk=128)

    # 4) Module wrapper + moving-stat side effect vs plain JAX.
    x = jax.random.normal(k3, (2, 8, 16, 16), jnp.float32)
    gn = GNPallas(input_dim=8, G=G, batch_size=2)
    y = jax.block_until_ready(gn(x))
    y_ref = _reference_gn(x, gn.gamma, gn.beta, G, gn.eps)
    assert jnp.allclose(y, y_ref, atol=1e-4, rtol=1e-4), "module: y mismatch"

    xg = x.reshape(2, G, -1).astype(jnp.float32)
    m_ref = xg.mean(-1).reshape(2, G, 1, 1, 1)
    v_ref = ((xg - xg.mean(-1, keepdims=True)) ** 2).mean(-1).reshape(2, G, 1, 1, 1)
    mm_ref = gn.mom * jnp.zeros_like(m_ref) + (1 - gn.mom) * m_ref
    mv_ref = gn.mom * jnp.ones_like(v_ref) + (1 - gn.mom) * v_ref
    assert jnp.allclose(gn.moving_mean, mm_ref, atol=1e-4, rtol=1e-4)
    assert jnp.allclose(gn.moving_var, mv_ref, atol=1e-4, rtol=1e-4)

    print("KERNEL_OK")
</pallas_src>

<mosaic_0001>
module attributes {stable_mosaic.version = 11 : i64} {
  func.func @_gn_fused_kernel(%arg0: i32, %arg1: memref<1x8x512xf32, #tpu.memory_space<vmem>>, %arg2: memref<1x8x512xf32, #tpu.memory_space<vmem>>, %arg3: memref<1x8x512xf32, #tpu.memory_space<vmem>>, %arg4: memref<1x8x512xf32, #tpu.memory_space<vmem>>, %arg5: memref<1x8x2xf32, #tpu.memory_space<vmem>>) attributes {dimension_semantics = [#tpu.dimension_semantics<parallel>], iteration_bounds = array<i64: 1>, scalar_prefetch = 0 : i64, scratch_operands = 0 : i64, tpu.core_type = #tpu.core_type<tc>, window_params = [{transform_indices = @transform_0, window_bounds = array<i64: 1, 8, 512>}, {pipeline_mode = #tpu.pipeline_mode<synchronous>, transform_indices = @transform_1, window_bounds = array<i64: 1, 8, 512>}, {pipeline_mode = #tpu.pipeline_mode<synchronous>, transform_indices = @transform_2, window_bounds = array<i64: 1, 8, 512>}, {transform_indices = @transform_3, window_bounds = array<i64: 1, 8, 512>}, {transform_indices = @transform_4, window_bounds = array<i64: 1, 8, 2>}]} {
    %c0 = arith.constant 0 : index
    %c0_0 = arith.constant 0 : index
    %c0_1 = arith.constant 0 : index
    %0 = vector.load %arg1[%c0, %c0_0, %c0_1] : memref<1x8x512xf32, #tpu.memory_space<vmem>>, vector<1x8x512xf32>
    %cst = arith.constant dense<0.000000e+00> : vector<1x8xf32>
    %1 = vector.multi_reduction <add>, %0, %cst [2] : vector<1x8x512xf32> to vector<1x8xf32>
    %2 = vector.shape_cast %1 : vector<1x8xf32> to vector<1x8x1xf32>
    %3 = arith.mulf %0, %0 : vector<1x8x512xf32>
    %cst_2 = arith.constant dense<0.000000e+00> : vector<1x8xf32>
    %4 = vector.multi_reduction <add>, %3, %cst_2 [2] : vector<1x8x512xf32> to vector<1x8xf32>
    %5 = vector.shape_cast %4 : vector<1x8xf32> to vector<1x8x1xf32>
    %cst_3 = arith.constant 0.001953125 : f32
    %6 = vector.broadcast %cst_3 : f32 to vector<1x8x1xf32>
    %7 = arith.mulf %2, %6 : vector<1x8x1xf32>
    %cst_4 = arith.constant 0.001953125 : f32
    %8 = vector.broadcast %cst_4 : f32 to vector<1x8x1xf32>
    %9 = arith.mulf %5, %8 : vector<1x8x1xf32>
    %10 = arith.mulf %7, %7 : vector<1x8x1xf32>
    %11 = arith.subf %9, %10 : vector<1x8x1xf32>
    %cst_5 = arith.constant 0.000000e+00 : f32
    %12 = vector.broadcast %cst_5 : f32 to vector<1x8x1xf32>
    %13 = arith.maximumf %11, %12 : vector<1x8x1xf32>
    %cst_6 = arith.constant 9.99999974E-6 : f32
    %14 = vector.broadcast %cst_6 : f32 to vector<1x8x1xf32>
    %15 = arith.addf %13, %14 : vector<1x8x1xf32>
    %16 = math.rsqrt %15 : vector<1x8x1xf32>
    %c0_7 = arith.constant 0 : index
    %c0_8 = arith.constant 0 : index
    %c0_9 = arith.constant 0 : index
    %17 = vector.load %arg2[%c0_7, %c0_8, %c0_9] : memref<1x8x512xf32, #tpu.memory_space<vmem>>, vector<1x8x512xf32>
    %18 = vector.broadcast %16 : vector<1x8x1xf32> to vector<1x8x512xf32>
    %19 = arith.mulf %17, %18 : vector<1x8x512xf32>
    %20 = vector.broadcast %7 : vector<1x8x1xf32> to vector<1x8x512xf32>
    %21 = arith.subf %0, %20 : vector<1x8x512xf32>
    %22 = arith.mulf %21, %19 : vector<1x8x512xf32>
    %c0_10 = arith.constant 0 : index
    %c0_11 = arith.constant 0 : index
    %c0_12 = arith.constant 0 : index
    %23 = vector.load %arg3[%c0_10, %c0_11, %c0_12] : memref<1x8x512xf32, #tpu.memory_space<vmem>>, vector<1x8x512xf32>
    %24 = arith.addf %22, %23 : vector<1x8x512xf32>
    %c0_13 = arith.constant 0 : index
    %c0_14 = arith.constant 0 : index
    %c0_15 = arith.constant 0 : index
    %25 = vector.load %arg4[%c0_13, %c0_14, %c0_15] : memref<1x8x512xf32, #tpu.memory_space<vmem>>, vector<1x8x512xf32>
    tpu.vector_store %arg4[%c0_13, %c0_14, %c0_15], %24 {strides = array<i32>} : memref<1x8x512xf32, #tpu.memory_space<vmem>>, vector<1x8x512xf32>,
    %26 = tpu.concatenate %7, %13 in 2 : vector<1x8x1xf32>, vector<1x8x1xf32> -> vector<1x8x2xf32>
    %c0_16 = arith.constant 0 : index
    %c0_17 = arith.constant 0 : index
    %c0_18 = arith.constant 0 : index
    %27 = vector.load %arg5[%c0_16, %c0_17, %c0_18] : memref<1x8x2xf32, #tpu.memory_space<vmem>>, vector<1x8x2xf32>
    tpu.vector_store %arg5[%c0_16, %c0_17, %c0_18], %26 {strides = array<i32>} : memref<1x8x2xf32, #tpu.memory_space<vmem>>, vector<1x8x2xf32>,
    return
  }
  func.func @transform_0(%arg0: i32) -> (i32, i32, i32) {
    %c0_i32 = arith.constant 0 : i32
    %c0_i32_0 = arith.constant 0 : i32
    %c0_i32_1 = arith.constant 0 : i32
    return %arg0, %c0_i32, %c0_i32_0 : i32, i32, i32
  }
  func.func @transform_1(%arg0: i32) -> (i32, i32, i32) {
    %c0_i32 = arith.constant 0 : i32
    %c0_i32_0 = arith.constant 0 : i32
    %c0_i32_1 = arith.constant 0 : i32
    %c0_i32_2 = arith.constant 0 : i32
    return %c0_i32, %c0_i32_0, %c0_i32_1 : i32, i32, i32
  }
  func.func @transform_2(%arg0: i32) -> (i32, i32, i32) {
    %c0_i32 = arith.constant 0 : i32
    %c0_i32_0 = arith.constant 0 : i32
    %c0_i32_1 = arith.constant 0 : i32
    %c0_i32_2 = arith.constant 0 : i32
    return %c0_i32, %c0_i32_0, %c0_i32_1 : i32, i32, i32
  }
  func.func @transform_3(%arg0: i32) -> (i32, i32, i32) {
    %c0_i32 = arith.constant 0 : i32
    %c0_i32_0 = arith.constant 0 : i32
    %c0_i32_1 = arith.constant 0 : i32
    return %arg0, %c0_i32, %c0_i32_0 : i32, i32, i32
  }
  func.func @transform_4(%arg0: i32) -> (i32, i32, i32) {
    %c0_i32 = arith.constant 0 : i32
    %c0_i32_0 = arith.constant 0 : i32
    %c0_i32_1 = arith.constant 0 : i32
    return %arg0, %c0_i32, %c0_i32_0 : i32, i32, i32
  }
}

</mosaic_0001>

<llo_original>
// kernel: tpu_custom_call.1
$region0: #{tpu_custom_call.1}
  #allocation0 [shape = 'u32[]', space=smem, size = 0x4, offset = 0x4, fixed_abs, tag = 'smem constant byte address 0x4 - core index']
  #allocation1 [shape = 'u32[72,128]{1,0:T(1,128)}', space=vmem, size = 0x9000, scoped, tag = 'internal scratch']
  %s0 = inlined_call_operand.hbm [shape: f32[1,8,512], index: 0, kind: input, shape index: {}]
  %s1 = inlined_call_operand.hbm [shape: f32[1,8,512], index: 1, kind: input, shape index: {}]
  %s2 = inlined_call_operand.hbm [shape: f32[1,8,512], index: 2, kind: input, shape index: {}]
  %s3 = inlined_call_operand.hbm [shape: f32[1,8,512], index: 3, kind: output, shape index: {0}]
  %s4 = inlined_call_operand.vmem [shape: f32[1,8,2], index: 4, kind: output, shape index: {1}]
  %5 = xla_tuple %s3, %s4
  %s6 = sld [smem:[#allocation0]]
  $region42: #{tpu_custom_call.1} parent=0
    _
  %s8 = ssub.s32 1, %s6
  %s9 = scalar_select 0, %s8, %s6
  $region1: #{tpu_custom_call.1} parent=0
    #allocation2 [shape = 'u8[16384]{0}', space=vmem, size = 0x4000, scoped, tag = 'input window, operand 0, single buffered']
    #allocation3 [shape = 's32[1]{0}', space=sflag, size = 0x4, scoped, tag = 'scoped memory for tpu_custom_call.1']
    #allocation4 [shape = 's32[1]{0}', space=sflag, size = 0x4, scoped, tag = 'scoped memory for tpu_custom_call.1']
    #allocation5 [shape = 'u8[16384]{0}', space=vmem, size = 0x4000, scoped, tag = 'input window, operand 1, single buffered']
    #allocation6 [shape = 's32[1]{0}', space=sflag, size = 0x4, scoped, tag = 'scoped memory for tpu_custom_call.1']
    #allocation7 [shape = 'u8[16384]{0}', space=vmem, size = 0x4000, scoped, tag = 'input window, operand 2, single buffered']
    #allocation8 [shape = 'u8[16384]{0}', space=vmem, size = 0x4000, scoped, tag = 'output window, operand 0, single buffered']
    %10 = vsyncpa [#allocation3], 0
    %11 = vsyncpa [#allocation6], 0
    %12 = vsyncpa [#allocation4], 0
    // Predicated region
    $region2: #{tpu_custom_call.1} parent=1 // pred_check
      _
    $region3: #{tpu_custom_call.1} parent=1 // pred_check_branch
      %14 = sbr.rel (0) target = $region5
    $region4: #{tpu_custom_call.1} parent=1 // pred_region
      %16 = vsyncadd [#allocation3], 0
      %s18 = sshll.u32 %s0, 4
      %s19 = int_to_ptr.hbm [resolvable:$true] %s18
      %s20 = sshll.u32 [#allocation2], 4
      %s21 = int_to_ptr.vmem [resolvable:$true] %s20
      %23 = dma.hbm_to_vmem [thread:$0]  %s19, 512, %s21, [#allocation3]
    $region5: #{tpu_custom_call.1} parent=1 // pred_fallthru
      _
    // Predicated region
    $region6: #{tpu_custom_call.1} parent=1 // pred_check
      _
    $region7: #{tpu_custom_call.1} parent=1 // pred_check_branch
      %25 = sbr.rel (0) target = $region9
    $region8: #{tpu_custom_call.1} parent=1 // pred_region
      %27 = vsyncadd [#allocation6], 0
      %s29 = sshll.u32 %s1, 4
      %s30 = int_to_ptr.hbm [resolvable:$true] %s29
      %s31 = sshll.u32 [#allocation5], 4
      %s32 = int_to_ptr.vmem [resolvable:$true] %s31
      %34 = dma.hbm_to_vmem [thread:$0]  %s30, 512, %s32, [#allocation6]
    $region9: #{tpu_custom_call.1} parent=1 // pred_fallthru
      _
    // Predicated region
    $region10: #{tpu_custom_call.1} parent=1 // pred_check
      _
    $region11: #{tpu_custom_call.1} parent=1 // pred_check_branch
      %36 = sbr.rel (0) target = $region13
    $region12: #{tpu_custom_call.1} parent=1 // pred_region
      %38 = vsyncadd [#allocation6], 0
      %s40 = sshll.u32 %s2, 4
      %s41 = int_to_ptr.hbm [resolvable:$true] %s40
      %s42 = sshll.u32 [#allocation7], 4
      %s43 = int_to_ptr.vmem [resolvable:$true] %s42
      %45 = dma.hbm_to_vmem [thread:$0]  %s41, 512, %s43, [#allocation6]
    $region13: #{tpu_custom_call.1} parent=1 // pred_fallthru
      _
    // Predicated region
    $region14: #{tpu_custom_call.1} parent=1 // pred_check
      _
    $region15: #{tpu_custom_call.1} parent=1 // pred_check_branch
      %47 = sbr.rel (0) target = $region17
    $region16: #{tpu_custom_call.1} parent=1 // pred_region
      %49 = dma.done [#allocation3], 512
    $region17: #{tpu_custom_call.1} parent=1 // pred_fallthru
      _
    // Predicated region
    $region18: #{tpu_custom_call.1} parent=1 // pred_check
      _
    $region19: #{tpu_custom_call.1} parent=1 // pred_check_branch
      %51 = sbr.rel (0) target = $region21
    $region20: #{tpu_custom_call.1} parent=1 // pred_region
      %53 = dma.done [#allocation6], 512
    $region21: #{tpu_custom_call.1} parent=1 // pred_fallthru
      _
    // Predicated region
    $region22: #{tpu_custom_call.1} parent=1 // pred_check
      _
    $region23: #{tpu_custom_call.1} parent=1 // pred_check_branch
      %55 = sbr.rel (0) target = $region25
    $region24: #{tpu_custom_call.1} parent=1 // pred_region
      %57 = dma.done [#allocation6], 512
    $region25: #{tpu_custom_call.1} parent=1 // pred_fallthru
      _
    %v58 = vld [vmem:[#allocation2] sm:$0xff]
    %v59 = vld [vmem:[#allocation2 + $0x8] sm:$0xff]
    %v60 = vld [vmem:[#allocation2 + $0x10] sm:$0xff]
    %v61 = vld [vmem:[#allocation2 + $0x18] sm:$0xff]
    %v62 = vadd.f32 %v58, %v59
    %v63 = vadd.f32 %v62, %v60
    %v64 = vadd.f32 %v63, %v61
    %65 = vadd.xlane.f32.xlu0 %v64
    %v66 = vpop.xlane.xlu0 %65
    %v67 = vmul.f32 %v58, %v58
    %v68 = vmul.f32 %v59, %v59
    %v69 = vmul.f32 %v60, %v60
    %v70 = vmul.f32 %v61, %v61
    %v71 = vadd.f32 %v67, %v68
    %v72 = vadd.f32 %v71, %v69
    %v73 = vadd.f32 %v72, %v70
    %74 = vadd.xlane.f32.xlu0 %v73
    %v75 = vpop.xlane.xlu0 %74
    %v76 = vmul.f32 %v66, 0.001953125
    %v77 = vmul.f32 %v75, 0.001953125
    %v78 = vmul.f32 %v76, %v76
    %v79 = vsub.f32 %v77, %v78
    %v80 = vmax.f32 %v79, 0.0
    %v81 = vadd.f32 %v80, 1e-05
    %v82 = vrsqrt.pop %v81
    %v83 = vmul.f32 %v82, %v81
    %v84 = vmul.f32 %v83, %v82
    %v85 = vmul.f32 0.5, %v84
    %v86 = vsub.f32 1.5, %v85
    %v87 = vmul.f32 %v82, %v86
    %vm88 = vweird.f32 %v81
    %vm89 = vweird.f32 %v82
    %vm90 = vmor %vm88, %vm89
    %v91 = vsel %vm90, %v82, %v87
    %v92 = vld [vmem:[#allocation5] sm:$0xff]
    %v93 = vld [vmem:[#allocation5 + $0x8] sm:$0xff]
    %v94 = vld [vmem:[#allocation5 + $0x10] sm:$0xff]
    %v95 = vld [vmem:[#allocation5 + $0x18] sm:$0xff]
    %v96 = vmul.f32 %v92, %v91
    %v97 = vmul.f32 %v93, %v91
    %v98 = vmul.f32 %v94, %v91
    %v99 = vmul.f32 %v95, %v91
    %v100 = vsub.f32 %v58, %v76
    %v101 = vsub.f32 %v59, %v76
    %v102 = vsub.f32 %v60, %v76
    %v103 = vsub.f32 %v61, %v76
    %v104 = vmul.f32 %v100, %v96
    %v105 = vmul.f32 %v101, %v97
    %v106 = vmul.f32 %v102, %v98
    %v107 = vmul.f32 %v103, %v99
    %v108 = vld [vmem:[#allocation7] sm:$0xff]
    %v109 = vld [vmem:[#allocation7 + $0x8] sm:$0xff]
    %v110 = vld [vmem:[#allocation7 + $0x10] sm:$0xff]
    %v111 = vld [vmem:[#allocation7 + $0x18] sm:$0xff]
    %v112 = vadd.f32 %v104, %v108
    %v113 = vadd.f32 %v105, %v109
    %v114 = vadd.f32 %v106, %v110
    %v115 = vadd.f32 %v107, %v111
    %116 = vst [vmem:[#allocation8] sm:$0xff] %v112
    %117 = vst [vmem:[#allocation8 + $0x8] sm:$0xff] %v113
    %118 = vst [vmem:[#allocation8 + $0x10] sm:$0xff] %v114
    %119 = vst [vmem:[#allocation8 + $0x18] sm:$0xff] %v115
    %vm120 = vcmask 7168
    %v121 = vsel %vm120, %v76, %v80
    %vm122 = vcmask 15360
    %123 = vst.msk [vmem:[%s4] sm:$0xff] %vm122, %v121
    // Predicated region
    $region26: #{tpu_custom_call.1} parent=1 // pred_check
      _
    $region27: #{tpu_custom_call.1} parent=1 // pred_check_branch
      %125 = sbr.rel (0) target = $region29
    $region28: #{tpu_custom_call.1} parent=1 // pred_region
      %127 = vsyncadd [#allocation4], 0
      %s129 = sshll.u32 [#allocation8], 4
      %s130 = int_to_ptr.vmem [resolvable:$true] %s129
      %s131 = sshll.u32 %s3, 4
      %s132 = int_to_ptr.hbm [resolvable:$true] %s131
      %134 = dma.vmem_to_hbm [thread:$0]  %s130, 512, %s132, [#allocation4]
    $region29: #{tpu_custom_call.1} parent=1 // pred_fallthru
      _
    // Predicated region
    $region30: #{tpu_custom_call.1} parent=1 // pred_check
      _
    $region31: #{tpu_custom_call.1} parent=1 // pred_check_branch
      %136 = sbr.rel (0) target = $region33
    $region32: #{tpu_custom_call.1} parent=1 // pred_region
      _
    $region33: #{tpu_custom_call.1} parent=1 // pred_fallthru
      _
    // Predicated region
    $region34: #{tpu_custom_call.1} parent=1 // pred_check
      _
    $region35: #{tpu_custom_call.1} parent=1 // pred_check_branch
      %138 = sbr.rel (0) target = $region37
    $region36: #{tpu_custom_call.1} parent=1 // pred_region
      %140 = dma.done [#allocation4], 512
    $region37: #{tpu_custom_call.1} parent=1 // pred_fallthru
      _
    // Predicated region
    $region38: #{tpu_custom_call.1} parent=1 // pred_check
      _
    $region39: #{tpu_custom_call.1} parent=1 // pred_check_branch
      %142 = sbr.rel (0) target = $region41
    $region40: #{tpu_custom_call.1} parent=1 // pred_region
      _
    $region41: #{tpu_custom_call.1} parent=1 // pred_fallthru
      _
    %143 = vsyncpa [#allocation3], 1
    %144 = vsyncpa [#allocation6], 1
    %145 = vsyncpa [#allocation4], 1

</llo_original>
